<compile_context>
chip_gen: v7x
topology: tpu7x:2x2x1
jax: 0.10.0
libtpu: 0.0.40
codegen_flags: <defaults>
</compile_context>

<pallas_src>
import math

import jax
import jax.numpy as jnp
from jax.experimental import pallas as pl
from jax.experimental.pallas import tpu as pltpu


def _make_kernel(cout):
    def kernel(x_ref, wcat_ref, aoff_ref, dm_ref, m_ref, bias_ref, o_ref):
        x = x_ref[...]                                                   # [R, Cin]
        # Single fused projection: [R, Cin] @ [Cin, 2*Cout] on the MXU.
        h = jnp.dot(x, wcat_ref[...], preferred_element_type=jnp.float32)
        h0 = h[:, :cout]                                                 # static slice (free)
        h1 = h[:, cout:]
        # Diagonal branch: (A*I)@(M*h0) folded to (diag(A)*M) * h0.
        diag_part = dm_ref[...] * h0                                     # [R, Cout]
        # Off-diagonal branch: block-diag(A_off) @ (M * h1), one MXU matmul.
        mh1 = m_ref[...] * h1
        off_part = jnp.dot(aoff_ref[...], mh1,
                           preferred_element_type=jnp.float32)           # [R, Cout]
        o_ref[...] = (diag_part + off_part + bias_ref[...]).astype(o_ref.dtype)

    return kernel


def modulated_graph_conv(x, w0, w1, adj, adj2, m, bias, *, target_rows=512):
    """x: [B, J, Cin] -> [B, J, Cout]."""
    B, J, Cin = x.shape
    Cout = w0.shape[1]

    # ---------- grid-invariant parameter prep (plain JAX glue) ----------
    a = adj + adj2
    a_sym = (a.T + a) * 0.5                       # symmetrized adjacency   [J, J]
    diag_a = jnp.diag(a_sym)                      # diag(A)                 [J]
    a_off = a_sym - jnp.diag(diag_a)              # A * (1 - I)             [J, J]
    w_cat = jnp.concatenate([w0, w1], axis=1)     # fused weights           [Cin, 2*Cout]
    dm = diag_a[:, None] * m                      # diag(A) * M             [J, Cout]

    # ---------- batch tiling ----------
    bt = max(1, target_rows // J)                 # rows per tile ~ target_rows
    bt = min(bt, B)
    if B > 1 and bt >= B:
        bt = -(-B // 2)                           # keep >=2 parallel steps (v7x: 2 TCs)
    if (bt * J) % 8 != 0 and bt != B:
        bt = B                                    # fall back to a single full-extent tile
    n_steps = -(-B // bt)
    B_pad = n_steps * bt
    R = bt * J                                    # rows per grid step (8-aligned here)

    x_flat = x.reshape(B * J, Cin)
    if B_pad != B:
        pad_rows = (B_pad - B) * J
        x_flat = jnp.concatenate(
            [x_flat, jnp.zeros((pad_rows, Cin), x_flat.dtype)], axis=0)

    # Block-diagonal off-diagonal adjacency: one 2-D matmul covers the whole tile.
    a_off_blk = jnp.kron(jnp.eye(bt, dtype=a_off.dtype), a_off)   # [R, R]
    dm_tile = jnp.tile(dm, (bt, 1))                               # [R, Cout]
    m_tile = jnp.tile(m, (bt, 1))                                 # [R, Cout]
    bias_2d = bias.reshape(1, Cout)

    grid_spec = pltpu.PrefetchScalarGridSpec(
        num_scalar_prefetch=0,
        grid=(n_steps,),
        in_specs=[
            pl.BlockSpec((R, Cin), lambda i: (i, 0)),          # x row tile
            pl.BlockSpec((Cin, 2 * Cout), lambda i: (0, 0)),   # fused W (resident)
            pl.BlockSpec((R, R), lambda i: (0, 0)),            # block-diag A_off (resident)
            pl.BlockSpec((R, Cout), lambda i: (0, 0)),         # diag(A)*M tiled (resident)
            pl.BlockSpec((R, Cout), lambda i: (0, 0)),         # M tiled (resident)
            pl.BlockSpec((1, Cout), lambda i: (0, 0)),         # bias (resident)
        ],
        out_specs=pl.BlockSpec((R, Cout), lambda i: (i, 0)),   # lane-dense 2-D slab
    )

    out_flat = pl.pallas_call(
        _make_kernel(Cout),
        out_shape=jax.ShapeDtypeStruct((B_pad * J, Cout), jnp.float32),
        grid_spec=grid_spec,
        compiler_params=pltpu.CompilerParams(
            dimension_semantics=("parallel",),
            vmem_limit_bytes=32 * 1024 * 1024,
        ),
    )(x_flat, w_cat, a_off_blk, dm_tile, m_tile, bias_2d)

    return out_flat[: B * J].reshape(B, J, Cout)


def reference(x, w0, w1, adj, adj2, m, bias):
    """Plain-JAX reference mirroring the PyTorch forward."""
    h0 = jnp.matmul(x, w0)
    h1 = jnp.matmul(x, w1)
    a = adj + adj2
    a = (a.T + a) / 2.0
    J = a.shape[0]
    eye = jnp.eye(J, dtype=jnp.float32)
    out = jnp.matmul(a * eye, m * h0) + jnp.matmul(a * (1.0 - eye), m * h1)
    return out + bias.reshape(1, 1, -1)


if __name__ == "__main__":
    # Small shapes consistent with the module: B batches of J graph nodes,
    # each with Cin input features, projected to Cout output features.
    B, J, Cin, Cout = 2, 16, 32, 32

    key = jax.random.PRNGKey(0)
    k_x, k_w, k_m, k_adj, k_b = jax.random.split(key, 5)

    # Deterministic, xavier-style parameter init (synthetic weights).
    gain = 1.414
    w_bound = gain * math.sqrt(6.0 / (Cin + Cout))
    W = jax.random.uniform(k_w, (2, Cin, Cout), jnp.float32, -w_bound, w_bound)
    m_bound = gain * math.sqrt(6.0 / (J + Cout))
    M = jax.random.uniform(k_m, (J, Cout), jnp.float32, -m_bound, m_bound)

    adj = jax.random.uniform(k_adj, (J, J), jnp.float32, 0.0, 1.0)
    adj2 = jnp.full((J, J), 1e-06, dtype=jnp.float32)  # init.constant_(adj2, 1e-6)

    stdv = 1.0 / math.sqrt(Cout)
    bias = jax.random.uniform(k_b, (Cout,), jnp.float32, -stdv, stdv)

    x = jax.random.normal(k_x, (B, J, Cin), jnp.float32)

    out = modulated_graph_conv(x, W[0], W[1], adj, adj2, M, bias)
    out = jax.block_until_ready(out)

    ref = reference(x, W[0], W[1], adj, adj2, M, bias)

    assert out.shape == (B, J, Cout), out.shape
    assert jnp.allclose(out, ref, atol=1e-4, rtol=1e-4), (
        float(jnp.max(jnp.abs(out - ref)))
    )
    print("KERNEL_OK")
</pallas_src>

<mosaic_0001>
module attributes {stable_mosaic.version = 11 : i64} {
  func.func @kernel(%arg0: i32, %arg1: memref<16x32xf32, #tpu.memory_space<vmem>>, %arg2: memref<32x64xf32, #tpu.memory_space<vmem>>, %arg3: memref<16x16xf32, #tpu.memory_space<vmem>>, %arg4: memref<16x32xf32, #tpu.memory_space<vmem>>, %arg5: memref<16x32xf32, #tpu.memory_space<vmem>>, %arg6: memref<1x32xf32, #tpu.memory_space<vmem>>, %arg7: memref<16x32xf32, #tpu.memory_space<vmem>>) attributes {dimension_semantics = [#tpu.dimension_semantics<parallel>], iteration_bounds = array<i64: 2>, scalar_prefetch = 0 : i64, scratch_operands = 0 : i64, tpu.core_type = #tpu.core_type<tc>, window_params = [{transform_indices = @transform_0, window_bounds = array<i64: 16, 32>}, {pipeline_mode = #tpu.pipeline_mode<synchronous>, transform_indices = @transform_1, window_bounds = array<i64: 32, 64>}, {pipeline_mode = #tpu.pipeline_mode<synchronous>, transform_indices = @transform_2, window_bounds = array<i64: 16, 16>}, {pipeline_mode = #tpu.pipeline_mode<synchronous>, transform_indices = @transform_3, window_bounds = array<i64: 16, 32>}, {pipeline_mode = #tpu.pipeline_mode<synchronous>, transform_indices = @transform_4, window_bounds = array<i64: 16, 32>}, {pipeline_mode = #tpu.pipeline_mode<synchronous>, transform_indices = @transform_5, window_bounds = array<i64: 1, 32>}, {transform_indices = @transform_6, window_bounds = array<i64: 16, 32>}]} {
    %c0 = arith.constant 0 : index
    %c0_0 = arith.constant 0 : index
    %0 = vector.load %arg1[%c0, %c0_0] : memref<16x32xf32, #tpu.memory_space<vmem>>, vector<16x32xf32>
    %c0_1 = arith.constant 0 : index
    %c0_2 = arith.constant 0 : index
    %1 = vector.load %arg2[%c0_1, %c0_2] : memref<32x64xf32, #tpu.memory_space<vmem>>, vector<32x64xf32>
    %cst = arith.constant dense<0.000000e+00> : vector<16x64xf32>
    %2 = tpu.matmul %0, %1, %cst {dimension_numbers = #tpu.dot_dimension_numbers<[1], [0], [0], [1], [0, 0, 1, 1], [], []>} : vector<16x32xf32>, vector<32x64xf32>, vector<16x64xf32> -> vector<16x64xf32>
    %3 = vector.extract_strided_slice %2 {offsets = [0, 0], sizes = [16, 32], strides = [1, 1]} : vector<16x64xf32> to vector<16x32xf32>
    %4 = vector.extract_strided_slice %2 {offsets = [0, 32], sizes = [16, 32], strides = [1, 1]} : vector<16x64xf32> to vector<16x32xf32>
    %c0_3 = arith.constant 0 : index
    %c0_4 = arith.constant 0 : index
    %5 = vector.load %arg4[%c0_3, %c0_4] : memref<16x32xf32, #tpu.memory_space<vmem>>, vector<16x32xf32>
    %6 = arith.mulf %5, %3 : vector<16x32xf32>
    %c0_5 = arith.constant 0 : index
    %c0_6 = arith.constant 0 : index
    %7 = vector.load %arg5[%c0_5, %c0_6] : memref<16x32xf32, #tpu.memory_space<vmem>>, vector<16x32xf32>
    %8 = arith.mulf %7, %4 : vector<16x32xf32>
    %c0_7 = arith.constant 0 : index
    %c0_8 = arith.constant 0 : index
    %9 = vector.load %arg3[%c0_7, %c0_8] : memref<16x16xf32, #tpu.memory_space<vmem>>, vector<16x16xf32>
    %cst_9 = arith.constant dense<0.000000e+00> : vector<16x32xf32>
    %10 = tpu.matmul %9, %8, %cst_9 {dimension_numbers = #tpu.dot_dimension_numbers<[1], [0], [0], [1], [0, 0, 1, 1], [], []>} : vector<16x16xf32>, vector<16x32xf32>, vector<16x32xf32> -> vector<16x32xf32>
    %11 = arith.addf %6, %10 : vector<16x32xf32>
    %c0_10 = arith.constant 0 : index
    %c0_11 = arith.constant 0 : index
    %12 = vector.load %arg6[%c0_10, %c0_11] : memref<1x32xf32, #tpu.memory_space<vmem>>, vector<1x32xf32>
    %13 = vector.broadcast %12 : vector<1x32xf32> to vector<16x32xf32>
    %14 = arith.addf %11, %13 : vector<16x32xf32>
    %c0_12 = arith.constant 0 : index
    %c0_13 = arith.constant 0 : index
    %15 = vector.load %arg7[%c0_12, %c0_13] : memref<16x32xf32, #tpu.memory_space<vmem>>, vector<16x32xf32>
    tpu.vector_store %arg7[%c0_12, %c0_13], %14 {strides = array<i32>} : memref<16x32xf32, #tpu.memory_space<vmem>>, vector<16x32xf32>,
    return
  }
  func.func @transform_0(%arg0: i32) -> (i32, i32) {
    %c0_i32 = arith.constant 0 : i32
    %c0_i32_0 = arith.constant 0 : i32
    return %arg0, %c0_i32 : i32, i32
  }
  func.func @transform_1(%arg0: i32) -> (i32, i32) {
    %c0_i32 = arith.constant 0 : i32
    %c0_i32_0 = arith.constant 0 : i32
    %c0_i32_1 = arith.constant 0 : i32
    return %c0_i32, %c0_i32_0 : i32, i32
  }
  func.func @transform_2(%arg0: i32) -> (i32, i32) {
    %c0_i32 = arith.constant 0 : i32
    %c0_i32_0 = arith.constant 0 : i32
    %c0_i32_1 = arith.constant 0 : i32
    return %c0_i32, %c0_i32_0 : i32, i32
  }
  func.func @transform_3(%arg0: i32) -> (i32, i32) {
    %c0_i32 = arith.constant 0 : i32
    %c0_i32_0 = arith.constant 0 : i32
    %c0_i32_1 = arith.constant 0 : i32
    return %c0_i32, %c0_i32_0 : i32, i32
  }
  func.func @transform_4(%arg0: i32) -> (i32, i32) {
    %c0_i32 = arith.constant 0 : i32
    %c0_i32_0 = arith.constant 0 : i32
    %c0_i32_1 = arith.constant 0 : i32
    return %c0_i32, %c0_i32_0 : i32, i32
  }
  func.func @transform_5(%arg0: i32) -> (i32, i32) {
    %c0_i32 = arith.constant 0 : i32
    %c0_i32_0 = arith.constant 0 : i32
    %c0_i32_1 = arith.constant 0 : i32
    return %c0_i32, %c0_i32_0 : i32, i32
  }
  func.func @transform_6(%arg0: i32) -> (i32, i32) {
    %c0_i32 = arith.constant 0 : i32
    %c0_i32_0 = arith.constant 0 : i32
    return %arg0, %c0_i32 : i32, i32
  }
}

</mosaic_0001>

<llo_original>
// kernel: tpu_custom_call.1
$region0: #{tpu_custom_call.1}
  #allocation0 [shape = 'u32[]', space=smem, size = 0x4, offset = 0x4, fixed_abs, tag = 'smem constant byte address 0x4 - core index']
  #allocation1 [shape = 'u32[144,128]{1,0:T(1,128)}', space=vmem, size = 0x12000, scoped, tag = 'internal scratch']
  %s0 = inlined_call_operand.hbm [shape: f32[32,32], index: 0, kind: input, shape index: {}]
  %s1 = inlined_call_operand.hbm [shape: f32[32,64], index: 1, kind: input, shape index: {}]
  %s2 = inlined_call_operand.hbm [shape: f32[16,16], index: 2, kind: input, shape index: {}]
  %s3 = inlined_call_operand.hbm [shape: f32[16,32], index: 3, kind: input, shape index: {}]
  %s4 = inlined_call_operand.hbm [shape: f32[16,32], index: 4, kind: input, shape index: {}]
  %s5 = inlined_call_operand.vmem [shape: f32[1,32], index: 5, kind: input, shape index: {}]
  %s6 = inlined_call_operand.hbm [shape: f32[32,32], index: 6, kind: output, shape index: {}]
  %s7 = sld [smem:[#allocation0]]
  $region77: #{tpu_custom_call.1} parent=0
    _
  %s9 = ssub.s32 1, %s7
  %s10 = scalar_select 0, %s9, %s7
  $region1: #{tpu_custom_call.1} parent=0
    #allocation2 [shape = 'u8[16384]{0}', space=vmem, size = 0x4000, scoped, tag = 'input window, operand 0']
    #allocation3 [shape = 's32[2]{0}', space=sflag, size = 0x8, scoped, tag = 'scoped memory for tpu_custom_call.1']
    #allocation4 [shape = 's32[2]{0}', space=sflag, size = 0x8, scoped, tag = 'scoped memory for tpu_custom_call.1']
    #allocation5 [shape = 'u8[16384]{0}', space=vmem, size = 0x4000, scoped, tag = 'input window, operand 1, single buffered']
    #allocation6 [shape = 's32[1]{0}', space=sflag, size = 0x4, scoped, tag = 'scoped memory for tpu_custom_call.1']
    #allocation7 [shape = 'u8[8192]{0}', space=vmem, size = 0x2000, scoped, tag = 'input window, operand 2, single buffered']
    #allocation8 [shape = 'u8[8192]{0}', space=vmem, size = 0x2000, scoped, tag = 'input window, operand 3, single buffered']
    #allocation9 [shape = 's32[1]{0}', space=sflag, size = 0x4, scoped, tag = 'scoped memory for tpu_custom_call.1']
    #allocation10 [shape = 'u8[8192]{0}', space=vmem, size = 0x2000, scoped, tag = 'input window, operand 4, single buffered']
    #allocation11 [shape = 'u8[16384]{0}', space=vmem, size = 0x4000, scoped, tag = 'output window, operand 0']
    %11 = vsyncpa [#allocation3], 0
    %s12 = scalar_lea.sflag [#allocation3], 1
    %13 = vsyncpa %s12, 0
    %14 = vsyncpa [#allocation6], 0
    %15 = vsyncpa [#allocation9], 0
    %16 = vsyncpa [#allocation4], 0
    %s17 = scalar_lea.sflag [#allocation4], 1
    %18 = vsyncpa %s17, 0
    loop: start=0, step=1, limit=4
    $region2: #{tpu_custom_call.1} parent=1 // loop_pre_header
      _
    $region3: #{tpu_custom_call.1} parent=1 // loop_header
      %s20 = sphi 0, %s24
      %p21 = scmp.ge.s32.totalorder %s20, 4
      %s30 = sphi 0, %s32
      %s33 = sphi 0, %s30
      %s34 = sphi 0, %s33
      %s50 = sphi 0, %s34
      %s54 = sphi 0, %s54
      %s56 = sphi 0, %s54
      %s57 = sphi 0, %s56
      %s71 = sphi 0, %s57
      %s75 = sphi 0, %s75
      %s77 = sphi 0, %s75
      %s78 = sphi 0, %s77
      %s92 = sphi 0, %s78
      %s96 = sphi 0, %s96
      %s98 = sphi 0, %s96
      %s99 = sphi 0, %s98
      %s113 = sphi 0, %s99
      %s117 = sphi 0, %s117
      %s119 = sphi 0, %s117
      %s120 = sphi 0, %s119
      %s134 = sphi 0, %s120
      %s138 = sphi 0, %s138
      %s140 = sphi 0, %s138
      %s141 = sphi 0, %s140
      %s155 = sphi 0, %s141
      %s161 = sphi 0, %s163
      %s164 = sphi 0, %s161
      %s165 = sphi 0, %s164
      %s181 = sphi 0, %s165
    $region4: #{tpu_custom_call.1} parent=1 // loop_header_branch
      %23 = sbr.rel (%p21) target = $region8
    $region5: #{tpu_custom_call.1} parent=1 // loop_body
      %s25 = ssub.s32 %s20, 1
      %s26 = ssub.s32 %s20, 2
      %s27 = sadd.s32 %s20, 1
      %s28 = ssub.s32 %s20, %s27
      %p29 = scmp.eq.s32.totalorder %s28, 0
      %s31 = sadd.s32 %s30, 1
      %s32 = scalar_select %p29, %s30, %s31
      %p35 = pneg %p29
      %p36 = scmp.eq.s32.totalorder %s20, 1
      %p37 = por %p35, %p36
      %p38 = scmp.ne.s32.totalorder %s30, %s33
      %p39 = scmp.eq.s32.totalorder %s20, 0
      %p40 = por %p38, %p39
      %p41 = scmp.ne.s32.totalorder %s30, %s33
      %p42 = scmp.eq.s32.totalorder %s25, 1
      %p43 = por %p41, %p42
      %p44 = scmp.ne.s32.totalorder %s33, %s34
      %p45 = scmp.eq.s32.totalorder %s25, 0
      %p46 = por %p44, %p45
      %p47 = scmp.ne.s32.totalorder %s33, %s34
      %p48 = scmp.eq.s32.totalorder %s26, 1
      %p49 = por %p47, %p48
      %p51 = scmp.ne.s32.totalorder %s34, %s50
      %p52 = scmp.eq.s32.totalorder %s26, 0
      %p53 = por %p51, %p52
      %s55 = sadd.s32 %s54, 1
      %p58 = scmp.eq.s32.totalorder %s20, 1
      %p59 = scmp.ne.s32.totalorder %s54, %s56
      %p60 = scmp.eq.s32.totalorder %s20, 0
      %p61 = por %p59, %p60
      %p62 = scmp.ne.s32.totalorder %s54, %s56
      %p63 = scmp.eq.s32.totalorder %s25, 1
      %p64 = por %p62, %p63
      %p65 = scmp.ne.s32.totalorder %s56, %s57
      %p66 = scmp.eq.s32.totalorder %s25, 0
      %p67 = por %p65, %p66
      %p68 = scmp.ne.s32.totalorder %s56, %s57
      %p69 = scmp.eq.s32.totalorder %s26, 1
      %p70 = por %p68, %p69
      %p72 = scmp.ne.s32.totalorder %s57, %s71
      %p73 = scmp.eq.s32.totalorder %s26, 0
      %p74 = por %p72, %p73
      %s76 = sadd.s32 %s75, 1
      %p79 = scmp.eq.s32.totalorder %s20, 1
      %p80 = scmp.ne.s32.totalorder %s75, %s77
      %p81 = scmp.eq.s32.totalorder %s20, 0
      %p82 = por %p80, %p81
      %p83 = scmp.ne.s32.totalorder %s75, %s77
      %p84 = scmp.eq.s32.totalorder %s25, 1
      %p85 = por %p83, %p84
      %p86 = scmp.ne.s32.totalorder %s77, %s78
      %p87 = scmp.eq.s32.totalorder %s25, 0
      %p88 = por %p86, %p87
      %p89 = scmp.ne.s32.totalorder %s77, %s78
      %p90 = scmp.eq.s32.totalorder %s26, 1
      %p91 = por %p89, %p90
      %p93 = scmp.ne.s32.totalorder %s78, %s92
      %p94 = scmp.eq.s32.totalorder %s26, 0
      %p95 = por %p93, %p94
      %s97 = sadd.s32 %s96, 1
      %p100 = scmp.eq.s32.totalorder %s20, 1
      %p101 = scmp.ne.s32.totalorder %s96, %s98
      %p102 = scmp.eq.s32.totalorder %s20, 0
      %p103 = por %p101, %p102
      %p104 = scmp.ne.s32.totalorder %s96, %s98
      %p105 = scmp.eq.s32.totalorder %s25, 1
      %p106 = por %p104, %p105
      %p107 = scmp.ne.s32.totalorder %s98, %s99
      %p108 = scmp.eq.s32.totalorder %s25, 0
      %p109 = por %p107, %p108
      %p110 = scmp.ne.s32.totalorder %s98, %s99
      %p111 = scmp.eq.s32.totalorder %s26, 1
      %p112 = por %p110, %p111
      %p114 = scmp.ne.s32.totalorder %s99, %s113
      %p115 = scmp.eq.s32.totalorder %s26, 0
      %p116 = por %p114, %p115
      %s118 = sadd.s32 %s117, 1
      %p121 = scmp.eq.s32.totalorder %s20, 1
      %p122 = scmp.ne.s32.totalorder %s117, %s119
      %p123 = scmp.eq.s32.totalorder %s20, 0
      %p124 = por %p122, %p123
      %p125 = scmp.ne.s32.totalorder %s117, %s119
      %p126 = scmp.eq.s32.totalorder %s25, 1
      %p127 = por %p125, %p126
      %p128 = scmp.ne.s32.totalorder %s119, %s120
      %p129 = scmp.eq.s32.totalorder %s25, 0
      %p130 = por %p128, %p129
      %p131 = scmp.ne.s32.totalorder %s119, %s120
      %p132 = scmp.eq.s32.totalorder %s26, 1
      %p133 = por %p131, %p132
      %p135 = scmp.ne.s32.totalorder %s120, %s134
      %p136 = scmp.eq.s32.totalorder %s26, 0
      %p137 = por %p135, %p136
      %s139 = sadd.s32 %s138, 1
      %p142 = scmp.eq.s32.totalorder %s20, 1
      %p143 = scmp.ne.s32.totalorder %s138, %s140
      %p144 = scmp.eq.s32.totalorder %s20, 0
      %p145 = por %p143, %p144
      %p146 = scmp.ne.s32.totalorder %s138, %s140
      %p147 = scmp.eq.s32.totalorder %s25, 1
      %p148 = por %p146, %p147
      %p149 = scmp.ne.s32.totalorder %s140, %s141
      %p150 = scmp.eq.s32.totalorder %s25, 0
      %p151 = por %p149, %p150
      %p152 = scmp.ne.s32.totalorder %s140, %s141
      %p153 = scmp.eq.s32.totalorder %s26, 1
      %p154 = por %p152, %p153
      %p156 = scmp.ne.s32.totalorder %s141, %s155
      %p157 = scmp.eq.s32.totalorder %s26, 0
      %p158 = por %p156, %p157
      %s159 = ssub.s32 %s20, %s27
      %p160 = scmp.eq.s32.totalorder %s159, 0
      %s162 = sadd.s32 %s161, 1
      %s163 = scalar_select %p160, %s161, %s162
      %p166 = pneg %p160
      %p167 = scmp.eq.s32.totalorder %s20, 1
      %p168 = por %p166, %p167
      %p169 = scmp.ne.s32.totalorder %s161, %s164
      %p170 = scmp.eq.s32.totalorder %s20, 0
      %p171 = por %p169, %p170
      %p172 = scmp.ne.s32.totalorder %s161, %s164
      %p173 = scmp.eq.s32.totalorder %s25, 1
      %p174 = por %p172, %p173
      %p175 = scmp.ne.s32.totalorder %s164, %s165
      %p176 = scmp.eq.s32.totalorder %s25, 0
      %p177 = por %p175, %p176
      %p178 = scmp.ne.s32.totalorder %s164, %s165
      %p179 = scmp.eq.s32.totalorder %s26, 1
      %p180 = por %p178, %p179
      %p182 = scmp.ne.s32.totalorder %s165, %s181
      %p183 = scmp.eq.s32.totalorder %s26, 0
      %p184 = por %p182, %p183
      %p185 = scmp.le.s32.totalorder 1, %s20
      %p186 = scmp.lt.s32.totalorder %s20, 3
      %p187 = pnand %p185, %p186
      %p188 = pneg %p187
      // Predicated region
      $region9: #{tpu_custom_call.1} parent=5 // pred_check
        _
      $region10: #{tpu_custom_call.1} parent=5 // pred_check_branch
        %190 = sbr.rel (%p187) target = $region12
      $region11: #{tpu_custom_call.1} parent=5 // pred_region
        %s191 = ssub.s32 %s20, 1
        // Predicated region
        $region13: #{tpu_custom_call.1} parent=11 // pred_check
          %p192 = pneg %p67
        $region14: #{tpu_custom_call.1} parent=11 // pred_check_branch
          %194 = sbr.rel (%p192) target = $region16
        $region15: #{tpu_custom_call.1} parent=11 // pred_region
          %s196 = ssub.s32 512, 512
          %197 = vsyncadd [#allocation6], %s196
          %s198 = sshll.u32 [#allocation5], 4
          %s199 = int_to_ptr.vmem [resolvable:$true] %s198
          %204 = dma.hbm_to_vmem [thread:$0]  %s1, 512, %s199, [#allocation6], 128, 128, 8
        $region16: #{tpu_custom_call.1} parent=11 // pred_fallthru
          _
        // Predicated region
        $region17: #{tpu_custom_call.1} parent=11 // pred_check
          %p205 = pneg %p88
        $region18: #{tpu_custom_call.1} parent=11 // pred_check_branch
          %207 = sbr.rel (%p205) target = $region20
        $region19: #{tpu_custom_call.1} parent=11 // pred_region
          %s209 = ssub.s32 256, 256
          %210 = vsyncadd [#allocation6], %s209
          %s211 = sshll.u32 [#allocation7], 4
          %s212 = int_to_ptr.vmem [resolvable:$true] %s211
          %217 = dma.hbm_to_vmem [thread:$0]  %s2, 256, %s212, [#allocation6], 128, 128, 8
        $region20: #{tpu_custom_call.1} parent=11 // pred_fallthru
          _
        // Predicated region
        $region21: #{tpu_custom_call.1} parent=11 // pred_check
          %p218 = pneg %p109
        $region22: #{tpu_custom_call.1} parent=11 // pred_check_branch
          %220 = sbr.rel (%p218) target = $region24
        $region23: #{tpu_custom_call.1} parent=11 // pred_region
          %s222 = ssub.s32 256, 256
          %223 = vsyncadd [#allocation9], %s222
          %s224 = sshll.u32 [#allocation8], 4
          %s225 = int_to_ptr.vmem [resolvable:$true] %s224
          %230 = dma.hbm_to_vmem [thread:$0]  %s3, 256, %s225, [#allocation9], 128, 128, 8
        $region24: #{tpu_custom_call.1} parent=11 // pred_fallthru
          _
        // Predicated region
        $region25: #{tpu_custom_call.1} parent=11 // pred_check
          %p231 = pneg %p130
        $region26: #{tpu_custom_call.1} parent=11 // pred_check_branch
          %233 = sbr.rel (%p231) target = $region28
        $region27: #{tpu_custom_call.1} parent=11 // pred_region
          %s235 = ssub.s32 256, 256
          %236 = vsyncadd [#allocation9], %s235
          %s237 = sshll.u32 [#allocation10], 4
          %s238 = int_to_ptr.vmem [resolvable:$true] %s237
          %243 = dma.hbm_to_vmem [thread:$0]  %s4, 256, %s238, [#allocation9], 128, 128, 8
        $region28: #{tpu_custom_call.1} parent=11 // pred_fallthru
          _
        // Predicated region
        $region29: #{tpu_custom_call.1} parent=11 // pred_check
          %p244 = pneg %p151
        $region30: #{tpu_custom_call.1} parent=11 // pred_check_branch
          %246 = sbr.rel (%p244) target = $region32
        $region31: #{tpu_custom_call.1} parent=11 // pred_region
          _
        $region32: #{tpu_custom_call.1} parent=11 // pred_fallthru
          _
      $region12: #{tpu_custom_call.1} parent=5 // pred_fallthru
        _
      %p247 = scmp.lt.s32.totalorder %s20, 2
      // Predicated region
      $region33: #{tpu_custom_call.1} parent=5 // pred_check
        %p248 = pneg %p247
      $region34: #{tpu_custom_call.1} parent=5 // pred_check_branch
        %250 = sbr.rel (%p248) target = $region36
      $region35: #{tpu_custom_call.1} parent=5 // pred_region
        // Predicated region
        $region37: #{tpu_custom_call.1} parent=35 // pred_check
          %p251 = pneg %p40
        $region38: #{tpu_custom_call.1} parent=35 // pred_check_branch
          %253 = sbr.rel (%p251) target = $region40
        $region39: #{tpu_custom_call.1} parent=35 // pred_region
          %s254 = sand.u32 %s30, 1
          %s255 = scalar_lea.sflag [#allocation3], %s254
          %s256 = sand.u32 %s30, 1
          %s257 = smul.addr %s256, 16
          %s258 = scalar_lea.vmem [#allocation2], %s257
          %s259 = smul.u32 2, %s20
          %s261 = ssub.s32 256, 256
          %262 = vsyncadd %s255, %s261
          %s263 = smul.addr %s259, 128
          %s264 = scalar_lea.hbm %s0, %s263
          %s265 = sshll.u32 %s258, 4
          %s266 = int_to_ptr.vmem [resolvable:$true] %s265
          %271 = dma.hbm_to_vmem [thread:$0]  %s264, 256, %s266, %s255, 128, 128, 8
        $region40: #{tpu_custom_call.1} parent=35 // pred_fallthru
          _
      $region36: #{tpu_custom_call.1} parent=5 // pred_fallthru
        _
      %p272 = scmp.le.s32.totalorder 1, %s20
      %p273 = scmp.lt.s32.totalorder %s20, 3
      %p274 = pnand %p272, %p273
      %p275 = pneg %p274
      // Predicated region
      $region41: #{tpu_custom_call.1} parent=5 // pred_check
        _
      $region42: #{tpu_custom_call.1} parent=5 // pred_check_branch
        %277 = sbr.rel (%p274) target = $region44
      $region43: #{tpu_custom_call.1} parent=5 // pred_region
        %s278 = ssub.s32 %s20, 1
        %s279 = sand.u32 %s33, 1
        %s280 = scalar_lea.sflag [#allocation3], %s279
        %s281 = sand.u32 %s33, 1
        %s282 = smul.addr %s281, 16
        %s283 = scalar_lea.vmem [#allocation2], %s282
        // Predicated region
        $region45: #{tpu_custom_call.1} parent=43 // pred_check
          %p284 = pneg %p46
        $region46: #{tpu_custom_call.1} parent=43 // pred_check_branch
          %286 = sbr.rel (%p284) target = $region48
        $region47: #{tpu_custom_call.1} parent=43 // pred_region
          %287 = dma.done %s280, 256
        $region48: #{tpu_custom_call.1} parent=43 // pred_fallthru
          _
        // Predicated region
        $region49: #{tpu_custom_call.1} parent=43 // pred_check
          %p288 = pneg %p67
        $region50: #{tpu_custom_call.1} parent=43 // pred_check_branch
          %290 = sbr.rel (%p288) target = $region52
        $region51: #{tpu_custom_call.1} parent=43 // pred_region
          %291 = dma.done [#allocation6], 512
        $region52: #{tpu_custom_call.1} parent=43 // pred_fallthru
          _
        // Predicated region
        $region53: #{tpu_custom_call.1} parent=43 // pred_check
          %p292 = pneg %p88
        $region54: #{tpu_custom_call.1} parent=43 // pred_check_branch
          %294 = sbr.rel (%p292) target = $region56
        $region55: #{tpu_custom_call.1} parent=43 // pred_region
          %295 = dma.done [#allocation6], 256
        $region56: #{tpu_custom_call.1} parent=43 // pred_fallthru
          _
        // Predicated region
        $region57: #{tpu_custom_call.1} parent=43 // pred_check
          %p296 = pneg %p109
        $region58: #{tpu_custom_call.1} parent=43 // pred_check_branch
          %298 = sbr.rel (%p296) target = $region60
        $region59: #{tpu_custom_call.1} parent=43 // pred_region
          %299 = dma.done [#allocation9], 256
        $region60: #{tpu_custom_call.1} parent=43 // pred_fallthru
          _
        // Predicated region
        $region61: #{tpu_custom_call.1} parent=43 // pred_check
          %p300 = pneg %p130
        $region62: #{tpu_custom_call.1} parent=43 // pred_check_branch
          %302 = sbr.rel (%p300) target = $region64
        $region63: #{tpu_custom_call.1} parent=43 // pred_region
          %303 = dma.done [#allocation9], 256
        $region64: #{tpu_custom_call.1} parent=43 // pred_fallthru
          _
        %s304 = sand.u32 %s33, 1
        %s305 = scalar_lea.sflag [#allocation3], %s304
        %s306 = sand.u32 %s33, 1
        %s307 = smul.addr %s306, 16
        %s308 = scalar_lea.vmem [#allocation2], %s307
        %p309 = pneg %p46
        %p310 = pneg %p43
        %p311 = pneg %p67
        %p312 = pneg %p64
        %p313 = pneg %p88
        %p314 = pneg %p85
        %p315 = pneg %p109
        %p316 = pneg %p106
        %p317 = pneg %p130
        %p318 = pneg %p127
        %p319 = pneg %p151
        %p320 = pneg %p148
        %p321 = pneg %p177
        %p322 = pneg %p174
        %s323 = sand.u32 %s164, 1
        %s324 = scalar_lea.sflag [#allocation4], %s323
        %s325 = sand.u32 %s164, 1
        %s326 = smul.addr %s325, 16
        %s327 = scalar_lea.vmem [#allocation11], %s326
        %s328 = smul.u32 2, %s25
        %s329 = smul.u32 2, %s25
        %v330 = vld [vmem:[%s283] sm:$0xff]
        %v331 = vld [vmem:[%s283 + $0x8] sm:$0xff]
        %v332 = vld [vmem:[#allocation5] sm:$0xff]
        %v333 = vld [vmem:[#allocation5 + $0x8] sm:$0xff]
        %v334 = vld [vmem:[#allocation5 + $0x10] sm:$0xff]
        %v335 = vld [vmem:[#allocation5 + $0x18] sm:$0xff]
        %vm336 = vcmask 261120
        %v338 = vsel %vm336, %v330, 0
        %v341 = vsel %vm336, %v331, 0
        %343 = vmatprep.subr.mxu0 0.0
        %344 = vmatpush1.msra.mxu0 %v332
        %345 = vmatprep.subr.mxu0 0.0
        %346 = vmatpush1.msra.mxu0 %v333
        %347 = vmatprep.subr.mxu0 0.0
        %348 = vmatpush1.msra.mxu0 %v334
        %349 = vmatprep.subr.mxu0 0.0
        %350 = vmatpush1.msra.mxu0 %v335
        %351 = vmatprep.subr.mxu0 0.0
        %352 = vmatpush1.msra.mxu0 0.0
        %353 = vmatprep.subr.mxu0 0.0
        %354 = vmatpush1.msra.mxu0 0.0
        %355 = vmatprep.subr.mxu0 0.0
        %356 = vmatpush1.msra.mxu0 0.0
        %357 = vmatprep.subr.mxu0 0.0
        %358 = vmatpush1.msra.mxu0 0.0
        %359 = vmatprep.subr.mxu0 0.0
        %360 = vmatpush1.msra.mxu0 0.0
        %361 = vmatprep.subr.mxu0 0.0
        %362 = vmatpush1.msra.mxu0 0.0
        %363 = vmatprep.subr.mxu0 0.0
        %364 = vmatpush1.msra.mxu0 0.0
        %365 = vmatprep.subr.mxu0 0.0
        %366 = vmatpush1.msra.mxu0 0.0
        %367 = vmatprep.subr.mxu0 0.0
        %368 = vmatpush1.msra.mxu0 0.0
        %369 = vmatprep.subr.mxu0 0.0
        %370 = vmatpush1.msra.mxu0 0.0
        %371 = vmatprep.subr.mxu0 0.0
        %372 = vmatpush1.msra.mxu0 0.0
        %373 = vmatprep.subr.mxu0 0.0
        %374 = vmatpush1.msra.mxu0 0.0
        %375 = vmatprep.subr.mxu0 0.0
        %376 = vmatpush1.msra.mxu0 0.0
        %377 = vmatprep.subr.mxu0 0.0
        %378 = vmatpush1.msra.mxu0 0.0
        %379 = vmatprep.subr.mxu0 0.0
        %380 = vmatpush1.msra.mxu0 0.0
        %381 = vmatprep.subr.mxu0 0.0
        %382 = vmatpush1.msra.mxu0 0.0
        %383 = vmatprep.subr.mxu0 0.0
        %384 = vmatpush1.msra.mxu0 0.0
        %385 = vmatprep.subr.mxu0 0.0
        %386 = vmatpush1.msra.mxu0 0.0
        %387 = vmatprep.subr.mxu0 0.0
        %388 = vmatpush1.msra.mxu0 0.0
        %389 = vmatprep.subr.mxu0 0.0
        %390 = vmatpush1.msra.mxu0 0.0
        %391 = vmatprep.subr.mxu0 0.0
        %392 = vmatpush1.msra.mxu0 0.0
        %393 = vmatprep.subr.mxu0 0.0
        %394 = vmatpush1.msra.mxu0 0.0
        %395 = vmatprep.subr.mxu0 0.0
        %396 = vmatpush1.msra.mxu0 0.0
        %397 = vmatprep.subr.mxu0 0.0
        %398 = vmatpush1.msra.mxu0 0.0
        %399 = vmatprep.subr.mxu0 0.0
        %400 = vmatpush1.msra.mxu0 0.0
        %401 = vmatprep.subr.mxu0 0.0
        %402 = vmatpush1.msra.mxu0 0.0
        %403 = vmatprep.subr.mxu0 0.0
        %404 = vmatpush1.msra.mxu0 0.0
        %405 = vmatprep.subr.mxu0 0.0
        %406 = vmatpush1.msra.mxu0 0.0
        %407 = vmatprep.mubr.f32.mxu0 0.0
        %408 = vmatmul.mubr.f32.gmra.mrb[0].mxu0 %v338
        %v409 = vpop.f32.mrb[0].mxu0
        %v410 = vadd.f32 0.0, %v409
        %v411 = vpop.f32.mrb[0].mxu0
        %412 = vmatprep.mubr.f32.mxu0 0.0
        %413 = vmatmul.mubr.f32.gmra.mrb[0].mxu0 %v341
        %v414 = vpop.f32.mrb[0].mxu0
        %v415 = vadd.f32 0.0, %v414
        %v416 = vpop.f32.mrb[0].mxu0
        %417 = vdwg.mxu0
        %v418 = vld [vmem:[#allocation8] sm:$0xff]
        %v419 = vld [vmem:[#allocation8 + $0x8] sm:$0xff]
        %v420 = vmul.f32 %v418, %v410
        %v421 = vmul.f32 %v419, %v415
        %v422 = vld [vmem:[#allocation10] sm:$0xff]
        %v423 = vld [vmem:[#allocation10 + $0x8] sm:$0xff]
        %426 = vrot.lane.b32.xlu0 %v410, 96
        %v427 = vpop.permute.xlu0 %426
        %428 = vrot.lane.b32.xlu0 %v415, 96
        %v429 = vpop.permute.xlu0 %428
        %v432 = vmul.f32 %v422, %v427
        %v433 = vmul.f32 %v423, %v429
        %v434 = vld [vmem:[#allocation7] sm:$0xff]
        %v435 = vld [vmem:[#allocation7 + $0x8] sm:$0xff]
        %vm436 = vcmask 130048
        %v438 = vsel %vm436, %v434, 0
        %v441 = vsel %vm436, %v435, 0
        %443 = vmatprep.subr.mxu0 0.0
        %444 = vmatpush1.msra.mxu0 %v432
        %445 = vmatprep.subr.mxu0 0.0
        %446 = vmatpush1.msra.mxu0 %v433
        %447 = vmatprep.subr.mxu0 0.0
        %448 = vmatpush1.msra.mxu0 0.0
        %449 = vmatprep.subr.mxu0 0.0
        %450 = vmatpush1.msra.mxu0 0.0
        %451 = vmatprep.subr.mxu0 0.0
        %452 = vmatpush1.msra.mxu0 0.0
        %453 = vmatprep.subr.mxu0 0.0
        %454 = vmatpush1.msra.mxu0 0.0
        %455 = vmatprep.subr.mxu0 0.0
        %456 = vmatpush1.msra.mxu0 0.0
        %457 = vmatprep.subr.mxu0 0.0
        %458 = vmatpush1.msra.mxu0 0.0
        %459 = vmatprep.subr.mxu0 0.0
        %460 = vmatpush1.msra.mxu0 0.0
        %461 = vmatprep.subr.mxu0 0.0
        %462 = vmatpush1.msra.mxu0 0.0
        %463 = vmatprep.subr.mxu0 0.0
        %464 = vmatpush1.msra.mxu0 0.0
        %465 = vmatprep.subr.mxu0 0.0
        %466 = vmatpush1.msra.mxu0 0.0
        %467 = vmatprep.subr.mxu0 0.0
        %468 = vmatpush1.msra.mxu0 0.0
        %469 = vmatprep.subr.mxu0 0.0
        %470 = vmatpush1.msra.mxu0 0.0
        %471 = vmatprep.subr.mxu0 0.0
        %472 = vmatpush1.msra.mxu0 0.0
        %473 = vmatprep.subr.mxu0 0.0
        %474 = vmatpush1.msra.mxu0 0.0
        %475 = vmatprep.subr.mxu0 0.0
        %476 = vmatpush1.msra.mxu0 0.0
        %477 = vmatprep.subr.mxu0 0.0
        %478 = vmatpush1.msra.mxu0 0.0
        %479 = vmatprep.subr.mxu0 0.0
        %480 = vmatpush1.msra.mxu0 0.0
        %481 = vmatprep.subr.mxu0 0.0
        %482 = vmatpush1.msra.mxu0 0.0
        %483 = vmatprep.subr.mxu0 0.0
        %484 = vmatpush1.msra.mxu0 0.0
        %485 = vmatprep.subr.mxu0 0.0
        %486 = vmatpush1.msra.mxu0 0.0
        %487 = vmatprep.subr.mxu0 0.0
        %488 = vmatpush1.msra.mxu0 0.0
        %489 = vmatprep.subr.mxu0 0.0
        %490 = vmatpush1.msra.mxu0 0.0
        %491 = vmatprep.subr.mxu0 0.0
        %492 = vmatpush1.msra.mxu0 0.0
        %493 = vmatprep.subr.mxu0 0.0
        %494 = vmatpush1.msra.mxu0 0.0
        %495 = vmatprep.subr.mxu0 0.0
        %496 = vmatpush1.msra.mxu0 0.0
        %497 = vmatprep.subr.mxu0 0.0
        %498 = vmatpush1.msra.mxu0 0.0
        %499 = vmatprep.subr.mxu0 0.0
        %500 = vmatpush1.msra.mxu0 0.0
        %501 = vmatprep.subr.mxu0 0.0
        %502 = vmatpush1.msra.mxu0 0.0
        %503 = vmatprep.subr.mxu0 0.0
        %504 = vmatpush1.msra.mxu0 0.0
        %505 = vmatprep.subr.mxu0 0.0
        %506 = vmatpush1.msra.mxu0 0.0
        %507 = vmatprep.mubr.f32.mxu0 0.0
        %508 = vmatmul.mubr.f32.gmra.mrb[0].mxu0 %v438
        %v509 = vpop.f32.mrb[0].mxu0
        %v510 = vadd.f32 0.0, %v509
        %v511 = vpop.f32.mrb[0].mxu0
        %512 = vmatprep.mubr.f32.mxu0 0.0
        %513 = vmatmul.mubr.f32.gmra.mrb[0].mxu0 %v441
        %v514 = vpop.f32.mrb[0].mxu0
        %v515 = vadd.f32 0.0, %v514
        %v516 = vpop.f32.mrb[0].mxu0
        %517 = vdwg.mxu0
        %v518 = vadd.f32 %v420, %v510
        %v519 = vadd.f32 %v421, %v515
        %v520 = vld [vmem:[%s5] sm:$0x1]
        %v522 = vlaneseq
        %v523 = vshrl.u32 %v522, 7
        %v524 = vsub.s32 0, %v523
        %v525 = vrot.slane %v520, %v524
        %v527 = vadd.f32 %v518, %v525
        %v528 = vadd.f32 %v519, %v525
        %529 = vst.msk [vmem:[%s327] sm:$0xff] %vm336, %v527
        %530 = vst.msk [vmem:[%s327 + $0x8] sm:$0xff] %vm336, %v528
        %s531 = sand.u32 %s164, 1
        %s532 = scalar_lea.sflag [#allocation4], %s531
        %s533 = sand.u32 %s164, 1
        %s534 = smul.addr %s533, 16
        %s535 = scalar_lea.vmem [#allocation11], %s534
        // Predicated region
        $region65: #{tpu_custom_call.1} parent=43 // pred_check
          %p536 = pneg %p174
        $region66: #{tpu_custom_call.1} parent=43 // pred_check_branch
          %538 = sbr.rel (%p536) target = $region68
        $region67: #{tpu_custom_call.1} parent=43 // pred_region
          %s539 = smul.u32 2, %s25
          %s541 = ssub.s32 256, 256
          %542 = vsyncadd %s532, %s541
          %s543 = smul.addr %s539, 128
          %s544 = scalar_lea.hbm %s6, %s543
          %s545 = sshll.u32 %s535, 4
          %s546 = int_to_ptr.vmem [resolvable:$true] %s545
          %551 = dma.vmem_to_hbm [thread:$0]  %s546, 256, %s544, %s532, 128, 128, 8
        $region68: #{tpu_custom_call.1} parent=43 // pred_fallthru
          _
      $region44: #{tpu_custom_call.1} parent=5 // pred_fallthru
        _
      %p552 = scmp.le.s32.totalorder 2, %s20
      // Predicated region
      $region69: #{tpu_custom_call.1} parent=5 // pred_check
        %p553 = pneg %p552
      $region70: #{tpu_custom_call.1} parent=5 // pred_check_branch
        %555 = sbr.rel (%p553) target = $region72
      $region71: #{tpu_custom_call.1} parent=5 // pred_region
        %s556 = ssub.s32 %s20, 2
        // Predicated region
        $region73: #{tpu_custom_call.1} parent=71 // pred_check
          %p557 = pneg %p180
        $region74: #{tpu_custom_call.1} parent=71 // pred_check_branch
          %559 = sbr.rel (%p557) target = $region76
        $region75: #{tpu_custom_call.1} parent=71 // pred_region
          %s560 = sand.u32 %s165, 1
          %s561 = scalar_lea.sflag [#allocation4], %s560
          %s562 = sand.u32 %s165, 1
          %s563 = smul.addr %s562, 16
          %s564 = scalar_lea.vmem [#allocation11], %s563
          %565 = dma.done %s561, 256
        $region76: #{tpu_custom_call.1} parent=71 // pred_fallthru
          _
      $region72: #{tpu_custom_call.1} parent=5 // pred_fallthru
        _
    $region6: #{tpu_custom_call.1} parent=1 // loop_footer
      %s24 = sadd.s32 1, %s20
    $region7: #{tpu_custom_call.1} parent=1 // loop_footer_branch
      %19 = sbr.rel target = $region3
    $region8: #{tpu_custom_call.1} parent=1 // loop_exit
      _
    %566 = vsyncpa [#allocation3], 1
    %s567 = scalar_lea.sflag [#allocation3], 1
    %568 = vsyncpa %s567, 1
    %569 = vsyncpa [#allocation6], 1
    %570 = vsyncpa [#allocation9], 1
    %571 = vsyncpa [#allocation4], 1
    %s572 = scalar_lea.sflag [#allocation4], 1
    %573 = vsyncpa %s572, 1

</llo_original>
